<compile_context>
chip_gen: v7x
topology: tpu7x:2x2x1
jax: 0.10.0
libtpu: 0.0.40
codegen_flags: <defaults>
</compile_context>

<pallas_src>
import functools

import jax
import jax.numpy as jnp
import numpy as np
from jax.experimental import pallas as pl
from jax.experimental.pallas import tpu as pltpu


def _make_kernel(Nb, Cf, padf, Kout):
    def kernel(x_ref, s_ref, o_ref):
        # x_ref: (Nb*Cf, K)         batch-major rows, lane-dense minor K
        # s_ref: (K, Kout)          0/1 (block-diag) selection matrix, constant
        # o_ref: (Nb, C_outf, Kout) channel-padded output block
        if padf > 0:
            zeros = jnp.zeros((Nb, padf, Kout), o_ref.dtype)
            o_ref[:, :padf, :] = zeros
            o_ref[:, padf + Cf:, :] = zeros

        # ONE matmul for the whole batch block (fills the MXU M dim).
        y = jnp.dot(x_ref[...], s_ref[...], preferred_element_type=jnp.float32)
        y = y.astype(o_ref.dtype)

        # Slab-store centre channels per batch element (stores only; Nb is a
        # small compile-time constant).
        for b in range(Nb):
            o_ref[b, padf:padf + Cf, :] = y[b * Cf:(b + 1) * Cf, :]

    return kernel


def _vmem_budget():
    """(vmem_limit_bytes, per-step block budget) sized per TPU generation."""
    try:
        cap = pltpu.get_tpu_info().vmem_capacity_bytes
    except Exception:
        cap = 64 << 20  # conservative default (v7x per-TensorCore VMEM)
    vmem_limit = min(cap * 3 // 4, 96 << 20)
    block_budget = max(4 << 20, vmem_limit // 5)  # leaves room for 2x buffering + sel
    return int(vmem_limit), int(block_budget)


def _pick_batch_block(N, Cf, per_n_bytes, budget_bytes, max_nb=64):
    """Batch elements per grid step.

    Hard constraint (Mosaic block-shape rule): the x block's second-minor dim
    Nb*Cf must be a multiple of 8, or the block must span the full dim
    (Nb == N).  Soft preferences: fit the VMEM budget, keep >= 2 grid steps
    (pipeline overlap / both v7x TensorCores), prefer an even step count.
    """
    target = max(1, min(N, budget_bytes // max(per_n_bytes, 1), max_nb))
    if N >= 2:
        target = max(1, min(target, N // 2))
    cands = [nb for nb in range(1, target + 1)
             if N % nb == 0 and (nb * Cf) % 8 == 0]
    if not cands:
        return N  # single full-batch block (tiny inputs); still layout-compliant
    even = [nb for nb in cands if (N // nb) % 2 == 0]
    return max(even) if even else max(cands)


@functools.lru_cache(maxsize=None)
def _selection_matrix(H, W, f):
    """0/1 matrix mapping flattened (f*H*W) rows -> subsampled (f*H/2*W/2) cols."""
    H_out, W_out = H // 2, W // 2
    HW, HW_out = H * W, H_out * W_out
    sel = np.zeros((HW, HW_out), dtype=np.float32)
    cols = np.arange(HW_out)
    rows = 2 * (cols // W_out) * W + 2 * (cols % W_out)
    sel[rows, cols] = 1.0
    if f > 1:
        sel = np.kron(np.eye(f, dtype=np.float32), sel)  # block-diagonal (K, Kout)
    return sel


def lambda_layer(x, planes):
    """Pallas equivalent of
       lambda x: F.pad(x[:, :, ::2, ::2], (0,0,0,0, planes//4, planes//4), "constant", 0)
    """
    N, C, H, W = x.shape
    assert H % 2 == 0 and W % 2 == 0, "stride-2 subsample expects even H, W"
    assert jnp.issubdtype(x.dtype, jnp.floating), "selection matmul expects float input"

    pad = planes // 4
    H_out, W_out = H // 2, W // 2
    C_out = C + 2 * pad
    HW, HW_out = H * W, H_out * W_out

    # Channel-fold factor f: pack f adjacent channels into the minor dim so the
    # stored minor dim is >= 128 lanes (unmasked vst), e.g. HW_out=64 -> f=2.
    f = 1
    if HW_out < 128 and 128 % HW_out == 0:
        cand = 128 // HW_out
        if C % cand == 0 and pad % cand == 0:
            f = cand
    Cf, padf = C // f, pad // f
    C_outf = Cf + 2 * padf
    K, Kout = f * HW, f * HW_out

    sel = jnp.asarray(_selection_matrix(H, W, f), dtype=x.dtype)

    # Free (contiguous) view: rows = (batch, channel-group), minor dim = f*H*W.
    x2 = x.reshape(N * Cf, K)

    itemsize = jnp.dtype(x.dtype).itemsize
    per_n_bytes = (Cf * K + C_outf * Kout) * itemsize
    vmem_limit, block_budget = _vmem_budget()
    Nb = _pick_batch_block(N, Cf, per_n_bytes, block_budget)

    kernel = _make_kernel(Nb, Cf, padf, Kout)

    cost = pl.CostEstimate(
        flops=2 * (N * Cf) * K * Kout,
        transcendentals=0,
        bytes_accessed=(N * Cf * K + K * Kout + N * C_outf * Kout) * itemsize,
    )

    out = pl.pallas_call(
        kernel,
        out_shape=jax.ShapeDtypeStruct((N, C_outf, Kout), x.dtype),
        grid_spec=pltpu.PrefetchScalarGridSpec(
            num_scalar_prefetch=0,
            grid=(N // Nb,),
            in_specs=[
                pl.BlockSpec((Nb * Cf, K), lambda n: (n, 0)),
                # Constant index_map: selection matrix stays resident, no re-DMA.
                pl.BlockSpec((K, Kout), lambda n: (0, 0)),
            ],
            out_specs=pl.BlockSpec((Nb, C_outf, Kout), lambda n: (n, 0, 0)),
        ),
        compiler_params=pltpu.CompilerParams(
            dimension_semantics=("parallel",),
            vmem_limit_bytes=vmem_limit,
        ),
        cost_estimate=cost,
    )(x2, sel)

    return out.reshape(N, C_out, H_out, W_out)


if __name__ == "__main__":
    key = jax.random.PRNGKey(0)

    def reference(x, planes):
        p = planes // 4
        return jnp.pad(x[:, :, ::2, ::2], ((0, 0), (p, p), (0, 0), (0, 0)))

    # Config 1: 16x16 -> 8x8 shortcut (HW_out = 64 -> lane-dense channel-fold path).
    k1, k2 = jax.random.split(key)
    x1 = jax.random.normal(k1, (4, 8, 16, 16), dtype=jnp.float32)
    out1 = jax.block_until_ready(lambda_layer(x1, planes=16))
    ref1 = reference(x1, 16)
    assert out1.shape == ref1.shape, (out1.shape, ref1.shape)
    assert out1.dtype == ref1.dtype
    assert jnp.allclose(out1, ref1, atol=1e-6), "mismatch vs reference (config 1)"

    # Config 2: 32x32 -> 16x16 shortcut (HW_out = 256, already lane-dense, f=1).
    x2 = jax.random.normal(k2, (2, 16, 32, 32), dtype=jnp.float32)
    out2 = jax.block_until_ready(lambda_layer(x2, planes=32))
    ref2 = reference(x2, 32)
    assert out2.shape == ref2.shape, (out2.shape, ref2.shape)
    assert out2.dtype == ref2.dtype
    assert jnp.allclose(out2, ref2, atol=1e-6), "mismatch vs reference (config 2)"

    print("KERNEL_OK")
</pallas_src>

<mosaic_0001>
module attributes {stable_mosaic.version = 11 : i64} {
  func.func @kernel(%arg0: i32, %arg1: memref<8x512xf32, #tpu.memory_space<vmem>>, %arg2: memref<512x128xf32, #tpu.memory_space<vmem>>, %arg3: memref<2x8x128xf32, #tpu.memory_space<vmem>>) attributes {dimension_semantics = [#tpu.dimension_semantics<parallel>], iteration_bounds = array<i64: 2>, scalar_prefetch = 0 : i64, scratch_operands = 0 : i64, tpu.core_type = #tpu.core_type<tc>, window_params = [{transform_indices = @transform_0, window_bounds = array<i64: 8, 512>}, {pipeline_mode = #tpu.pipeline_mode<synchronous>, transform_indices = @transform_1, window_bounds = array<i64: 512, 128>}, {transform_indices = @transform_2, window_bounds = array<i64: 2, 8, 128>}]} {
    %cst = arith.constant 0.000000e+00 : f32
    %0 = vector.broadcast %cst : f32 to vector<2x2x128xf32>
    %c0 = arith.constant 0 : index
    %c0_0 = arith.constant 0 : index
    %c0_1 = arith.constant 0 : index
    %1 = vector.load %arg3[%c0, %c0_0, %c0_1] : memref<2x8x128xf32, #tpu.memory_space<vmem>>, vector<2x2x128xf32>
    tpu.vector_store %arg3[%c0, %c0_0, %c0_1], %0 {strides = array<i32>} : memref<2x8x128xf32, #tpu.memory_space<vmem>>, vector<2x2x128xf32>,
    %c0_2 = arith.constant 0 : index
    %c6 = arith.constant 6 : index
    %c0_3 = arith.constant 0 : index
    %2 = vector.load %arg3[%c0_2, %c6, %c0_3] : memref<2x8x128xf32, #tpu.memory_space<vmem>>, vector<2x2x128xf32>
    tpu.vector_store %arg3[%c0_2, %c6, %c0_3], %0 {strides = array<i32>} : memref<2x8x128xf32, #tpu.memory_space<vmem>>, vector<2x2x128xf32>,
    %c0_4 = arith.constant 0 : index
    %c0_5 = arith.constant 0 : index
    %3 = vector.load %arg1[%c0_4, %c0_5] : memref<8x512xf32, #tpu.memory_space<vmem>>, vector<8x512xf32>
    %c0_6 = arith.constant 0 : index
    %c0_7 = arith.constant 0 : index
    %4 = vector.load %arg2[%c0_6, %c0_7] : memref<512x128xf32, #tpu.memory_space<vmem>>, vector<512x128xf32>
    %cst_8 = arith.constant dense<0.000000e+00> : vector<8x128xf32>
    %5 = tpu.matmul %3, %4, %cst_8 {dimension_numbers = #tpu.dot_dimension_numbers<[1], [0], [0], [1], [0, 0, 1, 1], [], []>} : vector<8x512xf32>, vector<512x128xf32>, vector<8x128xf32> -> vector<8x128xf32>
    %6 = vector.extract_strided_slice %5 {offsets = [0, 0], sizes = [4, 128], strides = [1, 1]} : vector<8x128xf32> to vector<4x128xf32>
    %c0_9 = arith.constant 0 : index
    %c2 = arith.constant 2 : index
    %c0_10 = arith.constant 0 : index
    %7 = vector.load %arg3[%c0_9, %c2, %c0_10] : memref<2x8x128xf32, #tpu.memory_space<vmem>>, vector<1x4x128xf32>
    %8 = vector.shape_cast %7 : vector<1x4x128xf32> to vector<4x128xf32>
    %9 = vector.shape_cast %6 : vector<4x128xf32> to vector<1x4x128xf32>
    tpu.vector_store %arg3[%c0_9, %c2, %c0_10], %9 {strides = array<i32>} : memref<2x8x128xf32, #tpu.memory_space<vmem>>, vector<1x4x128xf32>,
    %10 = vector.extract_strided_slice %5 {offsets = [4, 0], sizes = [4, 128], strides = [1, 1]} : vector<8x128xf32> to vector<4x128xf32>
    %c1 = arith.constant 1 : index
    %c2_11 = arith.constant 2 : index
    %c0_12 = arith.constant 0 : index
    %11 = vector.load %arg3[%c1, %c2_11, %c0_12] : memref<2x8x128xf32, #tpu.memory_space<vmem>>, vector<1x4x128xf32>
    %12 = vector.shape_cast %11 : vector<1x4x128xf32> to vector<4x128xf32>
    %13 = vector.shape_cast %10 : vector<4x128xf32> to vector<1x4x128xf32>
    tpu.vector_store %arg3[%c1, %c2_11, %c0_12], %13 {strides = array<i32>} : memref<2x8x128xf32, #tpu.memory_space<vmem>>, vector<1x4x128xf32>,
    return
  }
  func.func @transform_0(%arg0: i32) -> (i32, i32) {
    %c0_i32 = arith.constant 0 : i32
    %c0_i32_0 = arith.constant 0 : i32
    return %arg0, %c0_i32 : i32, i32
  }
  func.func @transform_1(%arg0: i32) -> (i32, i32) {
    %c0_i32 = arith.constant 0 : i32
    %c0_i32_0 = arith.constant 0 : i32
    %c0_i32_1 = arith.constant 0 : i32
    return %c0_i32, %c0_i32_0 : i32, i32
  }
  func.func @transform_2(%arg0: i32) -> (i32, i32, i32) {
    %c0_i32 = arith.constant 0 : i32
    %c0_i32_0 = arith.constant 0 : i32
    %c0_i32_1 = arith.constant 0 : i32
    return %arg0, %c0_i32, %c0_i32_0 : i32, i32, i32
  }
}

</mosaic_0001>

<llo_original>
// kernel: tpu_custom_call.1
$region0: #{tpu_custom_call.1}
  #allocation0 [shape = 'u32[]', space=smem, size = 0x4, offset = 0x4, fixed_abs, tag = 'smem constant byte address 0x4 - core index']
  #allocation1 [shape = 'u32[144,128]{1,0:T(1,128)}', space=vmem, size = 0x12000, scoped, tag = 'internal scratch']
  %s0 = inlined_call_operand.hbm [shape: f32[16,512], index: 0, kind: input, shape index: {}]
  %s1 = inlined_call_operand.hbm [shape: f32[512,128], index: 1, kind: input, shape index: {}]
  %s2 = inlined_call_operand.hbm [shape: f32[4,8,128], index: 2, kind: output, shape index: {}]
  %s3 = sld [smem:[#allocation0]]
  $region49: #{tpu_custom_call.1} parent=0
    _
  %s5 = ssub.s32 1, %s3
  %s6 = scalar_select 0, %s5, %s3
  $region1: #{tpu_custom_call.1} parent=0
    #allocation2 [shape = 'u8[32768]{0}', space=vmem, size = 0x8000, scoped, tag = 'input window, operand 0']
    #allocation3 [shape = 's32[2]{0}', space=sflag, size = 0x8, scoped, tag = 'scoped memory for tpu_custom_call.1']
    #allocation4 [shape = 's32[2]{0}', space=sflag, size = 0x8, scoped, tag = 'scoped memory for tpu_custom_call.1']
    #allocation5 [shape = 'u8[262144]{0}', space=vmem, size = 0x40000, scoped, tag = 'input window, operand 1, single buffered']
    #allocation6 [shape = 's32[1]{0}', space=sflag, size = 0x4, scoped, tag = 'scoped memory for tpu_custom_call.1']
    #allocation7 [shape = 'u8[16384]{0}', space=vmem, size = 0x4000, scoped, tag = 'output window, operand 0']
    %7 = vsyncpa [#allocation3], 0
    %s8 = scalar_lea.sflag [#allocation3], 1
    %9 = vsyncpa %s8, 0
    %10 = vsyncpa [#allocation6], 0
    %11 = vsyncpa [#allocation4], 0
    %s12 = scalar_lea.sflag [#allocation4], 1
    %13 = vsyncpa %s12, 0
    loop: start=0, step=1, limit=4
    $region2: #{tpu_custom_call.1} parent=1 // loop_pre_header
      _
    $region3: #{tpu_custom_call.1} parent=1 // loop_header
      %s15 = sphi 0, %s19
      %p16 = scmp.ge.s32.totalorder %s15, 4
      %s25 = sphi 0, %s27
      %s28 = sphi 0, %s25
      %s29 = sphi 0, %s28
      %s45 = sphi 0, %s29
      %s49 = sphi 0, %s49
      %s51 = sphi 0, %s49
      %s52 = sphi 0, %s51
      %s66 = sphi 0, %s52
      %s72 = sphi 0, %s74
      %s75 = sphi 0, %s72
      %s76 = sphi 0, %s75
      %s92 = sphi 0, %s76
    $region4: #{tpu_custom_call.1} parent=1 // loop_header_branch
      %18 = sbr.rel (%p16) target = $region8
    $region5: #{tpu_custom_call.1} parent=1 // loop_body
      %s20 = ssub.s32 %s15, 1
      %s21 = ssub.s32 %s15, 2
      %s22 = sadd.s32 %s15, 1
      %s23 = ssub.s32 %s15, %s22
      %p24 = scmp.eq.s32.totalorder %s23, 0
      %s26 = sadd.s32 %s25, 1
      %s27 = scalar_select %p24, %s25, %s26
      %p30 = pneg %p24
      %p31 = scmp.eq.s32.totalorder %s15, 1
      %p32 = por %p30, %p31
      %p33 = scmp.ne.s32.totalorder %s25, %s28
      %p34 = scmp.eq.s32.totalorder %s15, 0
      %p35 = por %p33, %p34
      %p36 = scmp.ne.s32.totalorder %s25, %s28
      %p37 = scmp.eq.s32.totalorder %s20, 1
      %p38 = por %p36, %p37
      %p39 = scmp.ne.s32.totalorder %s28, %s29
      %p40 = scmp.eq.s32.totalorder %s20, 0
      %p41 = por %p39, %p40
      %p42 = scmp.ne.s32.totalorder %s28, %s29
      %p43 = scmp.eq.s32.totalorder %s21, 1
      %p44 = por %p42, %p43
      %p46 = scmp.ne.s32.totalorder %s29, %s45
      %p47 = scmp.eq.s32.totalorder %s21, 0
      %p48 = por %p46, %p47
      %s50 = sadd.s32 %s49, 1
      %p53 = scmp.eq.s32.totalorder %s15, 1
      %p54 = scmp.ne.s32.totalorder %s49, %s51
      %p55 = scmp.eq.s32.totalorder %s15, 0
      %p56 = por %p54, %p55
      %p57 = scmp.ne.s32.totalorder %s49, %s51
      %p58 = scmp.eq.s32.totalorder %s20, 1
      %p59 = por %p57, %p58
      %p60 = scmp.ne.s32.totalorder %s51, %s52
      %p61 = scmp.eq.s32.totalorder %s20, 0
      %p62 = por %p60, %p61
      %p63 = scmp.ne.s32.totalorder %s51, %s52
      %p64 = scmp.eq.s32.totalorder %s21, 1
      %p65 = por %p63, %p64
      %p67 = scmp.ne.s32.totalorder %s52, %s66
      %p68 = scmp.eq.s32.totalorder %s21, 0
      %p69 = por %p67, %p68
      %s70 = ssub.s32 %s15, %s22
      %p71 = scmp.eq.s32.totalorder %s70, 0
      %s73 = sadd.s32 %s72, 1
      %s74 = scalar_select %p71, %s72, %s73
      %p77 = pneg %p71
      %p78 = scmp.eq.s32.totalorder %s15, 1
      %p79 = por %p77, %p78
      %p80 = scmp.ne.s32.totalorder %s72, %s75
      %p81 = scmp.eq.s32.totalorder %s15, 0
      %p82 = por %p80, %p81
      %p83 = scmp.ne.s32.totalorder %s72, %s75
      %p84 = scmp.eq.s32.totalorder %s20, 1
      %p85 = por %p83, %p84
      %p86 = scmp.ne.s32.totalorder %s75, %s76
      %p87 = scmp.eq.s32.totalorder %s20, 0
      %p88 = por %p86, %p87
      %p89 = scmp.ne.s32.totalorder %s75, %s76
      %p90 = scmp.eq.s32.totalorder %s21, 1
      %p91 = por %p89, %p90
      %p93 = scmp.ne.s32.totalorder %s76, %s92
      %p94 = scmp.eq.s32.totalorder %s21, 0
      %p95 = por %p93, %p94
      %p96 = scmp.le.s32.totalorder 1, %s15
      %p97 = scmp.lt.s32.totalorder %s15, 3
      %p98 = pnand %p96, %p97
      %p99 = pneg %p98
      // Predicated region
      $region9: #{tpu_custom_call.1} parent=5 // pred_check
        _
      $region10: #{tpu_custom_call.1} parent=5 // pred_check_branch
        %101 = sbr.rel (%p98) target = $region12
      $region11: #{tpu_custom_call.1} parent=5 // pred_region
        %s102 = ssub.s32 %s15, 1
        // Predicated region
        $region13: #{tpu_custom_call.1} parent=11 // pred_check
          %p103 = pneg %p62
        $region14: #{tpu_custom_call.1} parent=11 // pred_check_branch
          %105 = sbr.rel (%p103) target = $region16
        $region15: #{tpu_custom_call.1} parent=11 // pred_region
          %s107 = ssub.s32 8192, 8192
          %108 = vsyncadd [#allocation6], %s107
          %s109 = sshll.u32 [#allocation5], 4
          %s110 = int_to_ptr.vmem [resolvable:$true] %s109
          %115 = dma.hbm_to_vmem [thread:$0]  %s1, 8192, %s110, [#allocation6], 128, 128, 8
        $region16: #{tpu_custom_call.1} parent=11 // pred_fallthru
          _
      $region12: #{tpu_custom_call.1} parent=5 // pred_fallthru
        _
      %p116 = scmp.lt.s32.totalorder %s15, 2
      // Predicated region
      $region17: #{tpu_custom_call.1} parent=5 // pred_check
        %p117 = pneg %p116
      $region18: #{tpu_custom_call.1} parent=5 // pred_check_branch
        %119 = sbr.rel (%p117) target = $region20
      $region19: #{tpu_custom_call.1} parent=5 // pred_region
        // Predicated region
        $region21: #{tpu_custom_call.1} parent=19 // pred_check
          %p120 = pneg %p35
        $region22: #{tpu_custom_call.1} parent=19 // pred_check_branch
          %122 = sbr.rel (%p120) target = $region24
        $region23: #{tpu_custom_call.1} parent=19 // pred_region
          %s123 = sand.u32 %s25, 1
          %s124 = scalar_lea.sflag [#allocation3], %s123
          %s125 = sand.u32 %s25, 1
          %s126 = smul.addr %s125, 32
          %s127 = scalar_lea.vmem [#allocation2], %s126
          %s129 = ssub.s32 512, 512
          %130 = vsyncadd %s124, %s129
          %s131 = smul.addr %s15, 4
          %s132 = smul.addr %s131, 128
          %s133 = scalar_lea.hbm %s0, %s132
          %s135 = sshll.u32 %s127, 4
          %s136 = int_to_ptr.vmem [resolvable:$true] %s135
          %138 = dma.hbm_to_vmem [thread:$0]  %s133, 512, %s136, %s124
        $region24: #{tpu_custom_call.1} parent=19 // pred_fallthru
          _
      $region20: #{tpu_custom_call.1} parent=5 // pred_fallthru
        _
      %p139 = scmp.le.s32.totalorder 1, %s15
      %p140 = scmp.lt.s32.totalorder %s15, 3
      %p141 = pnand %p139, %p140
      %p142 = pneg %p141
      // Predicated region
      $region25: #{tpu_custom_call.1} parent=5 // pred_check
        _
      $region26: #{tpu_custom_call.1} parent=5 // pred_check_branch
        %144 = sbr.rel (%p141) target = $region28
      $region27: #{tpu_custom_call.1} parent=5 // pred_region
        %s145 = ssub.s32 %s15, 1
        %s146 = sand.u32 %s28, 1
        %s147 = scalar_lea.sflag [#allocation3], %s146
        %s148 = sand.u32 %s28, 1
        %s149 = smul.addr %s148, 32
        %s150 = scalar_lea.vmem [#allocation2], %s149
        // Predicated region
        $region29: #{tpu_custom_call.1} parent=27 // pred_check
          %p151 = pneg %p41
        $region30: #{tpu_custom_call.1} parent=27 // pred_check_branch
          %153 = sbr.rel (%p151) target = $region32
        $region31: #{tpu_custom_call.1} parent=27 // pred_region
          %154 = dma.done %s147, 512
        $region32: #{tpu_custom_call.1} parent=27 // pred_fallthru
          _
        // Predicated region
        $region33: #{tpu_custom_call.1} parent=27 // pred_check
          %p155 = pneg %p62
        $region34: #{tpu_custom_call.1} parent=27 // pred_check_branch
          %157 = sbr.rel (%p155) target = $region36
        $region35: #{tpu_custom_call.1} parent=27 // pred_region
          %158 = dma.done [#allocation6], 8192
        $region36: #{tpu_custom_call.1} parent=27 // pred_fallthru
          _
        %s159 = sand.u32 %s28, 1
        %s160 = scalar_lea.sflag [#allocation3], %s159
        %s161 = sand.u32 %s28, 1
        %s162 = smul.addr %s161, 32
        %s163 = scalar_lea.vmem [#allocation2], %s162
        %p164 = pneg %p41
        %p165 = pneg %p38
        %p166 = pneg %p62
        %p167 = pneg %p59
        %p168 = pneg %p88
        %p169 = pneg %p85
        %s170 = sand.u32 %s75, 1
        %s171 = scalar_lea.sflag [#allocation4], %s170
        %s172 = sand.u32 %s75, 1
        %s173 = smul.addr %s172, 16
        %s174 = scalar_lea.vmem [#allocation7], %s173
        %s175 = smul.u32 2, %s20
        %176 = vst [vmem:[%s174] sm:$0x3] 0.0
        %177 = vst [vmem:[%s174 + $0x8] sm:$0x3] 0.0
        %178 = vst [vmem:[%s174 + $0x6] sm:$0x3] 0.0
        %179 = vst [vmem:[%s174 + $0xe] sm:$0x3] 0.0
        %v180 = vld [vmem:[%s150] sm:$0xff]
        %v181 = vld [vmem:[%s150 + $0x8] sm:$0xff]
        %v182 = vld [vmem:[%s150 + $0x10] sm:$0xff]
        %v183 = vld [vmem:[%s150 + $0x18] sm:$0xff]
        %v184 = vld [vmem:[#allocation5] sm:$0xff]
        %v185 = vld [vmem:[#allocation5 + $0x8] sm:$0xff]
        %v186 = vld [vmem:[#allocation5 + $0x10] sm:$0xff]
        %v187 = vld [vmem:[#allocation5 + $0x18] sm:$0xff]
        %v188 = vld [vmem:[#allocation5 + $0x20] sm:$0xff]
        %v189 = vld [vmem:[#allocation5 + $0x28] sm:$0xff]
        %v190 = vld [vmem:[#allocation5 + $0x30] sm:$0xff]
        %v191 = vld [vmem:[#allocation5 + $0x38] sm:$0xff]
        %v192 = vld [vmem:[#allocation5 + $0x40] sm:$0xff]
        %v193 = vld [vmem:[#allocation5 + $0x48] sm:$0xff]
        %v194 = vld [vmem:[#allocation5 + $0x50] sm:$0xff]
        %v195 = vld [vmem:[#allocation5 + $0x58] sm:$0xff]
        %v196 = vld [vmem:[#allocation5 + $0x60] sm:$0xff]
        %v197 = vld [vmem:[#allocation5 + $0x68] sm:$0xff]
        %v198 = vld [vmem:[#allocation5 + $0x70] sm:$0xff]
        %v199 = vld [vmem:[#allocation5 + $0x78] sm:$0xff]
        %v200 = vld [vmem:[#allocation5 + $0x80] sm:$0xff]
        %v201 = vld [vmem:[#allocation5 + $0x88] sm:$0xff]
        %v202 = vld [vmem:[#allocation5 + $0x90] sm:$0xff]
        %v203 = vld [vmem:[#allocation5 + $0x98] sm:$0xff]
        %v204 = vld [vmem:[#allocation5 + $0xa0] sm:$0xff]
        %v205 = vld [vmem:[#allocation5 + $0xa8] sm:$0xff]
        %v206 = vld [vmem:[#allocation5 + $0xb0] sm:$0xff]
        %v207 = vld [vmem:[#allocation5 + $0xb8] sm:$0xff]
        %v208 = vld [vmem:[#allocation5 + $0xc0] sm:$0xff]
        %v209 = vld [vmem:[#allocation5 + $0xc8] sm:$0xff]
        %v210 = vld [vmem:[#allocation5 + $0xd0] sm:$0xff]
        %v211 = vld [vmem:[#allocation5 + $0xd8] sm:$0xff]
        %v212 = vld [vmem:[#allocation5 + $0xe0] sm:$0xff]
        %v213 = vld [vmem:[#allocation5 + $0xe8] sm:$0xff]
        %v214 = vld [vmem:[#allocation5 + $0xf0] sm:$0xff]
        %v215 = vld [vmem:[#allocation5 + $0xf8] sm:$0xff]
        %v216 = vld [vmem:[#allocation5 + $0x100] sm:$0xff]
        %v217 = vld [vmem:[#allocation5 + $0x108] sm:$0xff]
        %v218 = vld [vmem:[#allocation5 + $0x110] sm:$0xff]
        %v219 = vld [vmem:[#allocation5 + $0x118] sm:$0xff]
        %v220 = vld [vmem:[#allocation5 + $0x120] sm:$0xff]
        %v221 = vld [vmem:[#allocation5 + $0x128] sm:$0xff]
        %v222 = vld [vmem:[#allocation5 + $0x130] sm:$0xff]
        %v223 = vld [vmem:[#allocation5 + $0x138] sm:$0xff]
        %v224 = vld [vmem:[#allocation5 + $0x140] sm:$0xff]
        %v225 = vld [vmem:[#allocation5 + $0x148] sm:$0xff]
        %v226 = vld [vmem:[#allocation5 + $0x150] sm:$0xff]
        %v227 = vld [vmem:[#allocation5 + $0x158] sm:$0xff]
        %v228 = vld [vmem:[#allocation5 + $0x160] sm:$0xff]
        %v229 = vld [vmem:[#allocation5 + $0x168] sm:$0xff]
        %v230 = vld [vmem:[#allocation5 + $0x170] sm:$0xff]
        %v231 = vld [vmem:[#allocation5 + $0x178] sm:$0xff]
        %v232 = vld [vmem:[#allocation5 + $0x180] sm:$0xff]
        %v233 = vld [vmem:[#allocation5 + $0x188] sm:$0xff]
        %v234 = vld [vmem:[#allocation5 + $0x190] sm:$0xff]
        %v235 = vld [vmem:[#allocation5 + $0x198] sm:$0xff]
        %v236 = vld [vmem:[#allocation5 + $0x1a0] sm:$0xff]
        %v237 = vld [vmem:[#allocation5 + $0x1a8] sm:$0xff]
        %v238 = vld [vmem:[#allocation5 + $0x1b0] sm:$0xff]
        %v239 = vld [vmem:[#allocation5 + $0x1b8] sm:$0xff]
        %v240 = vld [vmem:[#allocation5 + $0x1c0] sm:$0xff]
        %v241 = vld [vmem:[#allocation5 + $0x1c8] sm:$0xff]
        %v242 = vld [vmem:[#allocation5 + $0x1d0] sm:$0xff]
        %v243 = vld [vmem:[#allocation5 + $0x1d8] sm:$0xff]
        %v244 = vld [vmem:[#allocation5 + $0x1e0] sm:$0xff]
        %v245 = vld [vmem:[#allocation5 + $0x1e8] sm:$0xff]
        %v246 = vld [vmem:[#allocation5 + $0x1f0] sm:$0xff]
        %v247 = vld [vmem:[#allocation5 + $0x1f8] sm:$0xff]
        %248 = vmatprep.subr.mxu0 0.0
        %249 = vmatpush1.msra.mxu0 %v184
        %250 = vmatprep.subr.mxu0 0.0
        %251 = vmatpush1.msra.mxu0 %v185
        %252 = vmatprep.subr.mxu0 0.0
        %253 = vmatpush1.msra.mxu0 %v186
        %254 = vmatprep.subr.mxu0 0.0
        %255 = vmatpush1.msra.mxu0 %v187
        %256 = vmatprep.subr.mxu0 0.0
        %257 = vmatpush1.msra.mxu0 %v188
        %258 = vmatprep.subr.mxu0 0.0
        %259 = vmatpush1.msra.mxu0 %v189
        %260 = vmatprep.subr.mxu0 0.0
        %261 = vmatpush1.msra.mxu0 %v190
        %262 = vmatprep.subr.mxu0 0.0
        %263 = vmatpush1.msra.mxu0 %v191
        %264 = vmatprep.subr.mxu0 0.0
        %265 = vmatpush1.msra.mxu0 %v192
        %266 = vmatprep.subr.mxu0 0.0
        %267 = vmatpush1.msra.mxu0 %v193
        %268 = vmatprep.subr.mxu0 0.0
        %269 = vmatpush1.msra.mxu0 %v194
        %270 = vmatprep.subr.mxu0 0.0
        %271 = vmatpush1.msra.mxu0 %v195
        %272 = vmatprep.subr.mxu0 0.0
        %273 = vmatpush1.msra.mxu0 %v196
        %274 = vmatprep.subr.mxu0 0.0
        %275 = vmatpush1.msra.mxu0 %v197
        %276 = vmatprep.subr.mxu0 0.0
        %277 = vmatpush1.msra.mxu0 %v198
        %278 = vmatprep.subr.mxu0 0.0
        %279 = vmatpush1.msra.mxu0 %v199
        %280 = vmatprep.subr.mxu0 0.0
        %281 = vmatpush1.msra.mxu0 %v200
        %282 = vmatprep.subr.mxu0 0.0
        %283 = vmatpush1.msra.mxu0 %v201
        %284 = vmatprep.subr.mxu0 0.0
        %285 = vmatpush1.msra.mxu0 %v202
        %286 = vmatprep.subr.mxu0 0.0
        %287 = vmatpush1.msra.mxu0 %v203
        %288 = vmatprep.subr.mxu0 0.0
        %289 = vmatpush1.msra.mxu0 %v204
        %290 = vmatprep.subr.mxu0 0.0
        %291 = vmatpush1.msra.mxu0 %v205
        %292 = vmatprep.subr.mxu0 0.0
        %293 = vmatpush1.msra.mxu0 %v206
        %294 = vmatprep.subr.mxu0 0.0
        %295 = vmatpush1.msra.mxu0 %v207
        %296 = vmatprep.subr.mxu0 0.0
        %297 = vmatpush1.msra.mxu0 %v208
        %298 = vmatprep.subr.mxu0 0.0
        %299 = vmatpush1.msra.mxu0 %v209
        %300 = vmatprep.subr.mxu0 0.0
        %301 = vmatpush1.msra.mxu0 %v210
        %302 = vmatprep.subr.mxu0 0.0
        %303 = vmatpush1.msra.mxu0 %v211
        %304 = vmatprep.subr.mxu0 0.0
        %305 = vmatpush1.msra.mxu0 %v212
        %306 = vmatprep.subr.mxu0 0.0
        %307 = vmatpush1.msra.mxu0 %v213
        %308 = vmatprep.subr.mxu0 0.0
        %309 = vmatpush1.msra.mxu0 %v214
        %310 = vmatprep.subr.mxu0 0.0
        %311 = vmatpush1.msra.mxu0 %v215
        %312 = vmatprep.mubr.f32.mxu0 %v181
        %313 = vmatmul.mubr.f32.gmra.mrb[0].mxu0 %v180
        %v314 = vpop.f32.mrb[0].mxu0
        %v315 = vadd.f32 0.0, %v314
        %v316 = vpop.f32.mrb[0].mxu0
        %317 = vdwg.mxu0
        %318 = vmatprep.subr.mxu0 0.0
        %319 = vmatpush1.msra.mxu0 %v216
        %320 = vmatprep.subr.mxu0 0.0
        %321 = vmatpush1.msra.mxu0 %v217
        %322 = vmatprep.subr.mxu0 0.0
        %323 = vmatpush1.msra.mxu0 %v218
        %324 = vmatprep.subr.mxu0 0.0
        %325 = vmatpush1.msra.mxu0 %v219
        %326 = vmatprep.subr.mxu0 0.0
        %327 = vmatpush1.msra.mxu0 %v220
        %328 = vmatprep.subr.mxu0 0.0
        %329 = vmatpush1.msra.mxu0 %v221
        %330 = vmatprep.subr.mxu0 0.0
        %331 = vmatpush1.msra.mxu0 %v222
        %332 = vmatprep.subr.mxu0 0.0
        %333 = vmatpush1.msra.mxu0 %v223
        %334 = vmatprep.subr.mxu0 0.0
        %335 = vmatpush1.msra.mxu0 %v224
        %336 = vmatprep.subr.mxu0 0.0
        %337 = vmatpush1.msra.mxu0 %v225
        %338 = vmatprep.subr.mxu0 0.0
        %339 = vmatpush1.msra.mxu0 %v226
        %340 = vmatprep.subr.mxu0 0.0
        %341 = vmatpush1.msra.mxu0 %v227
        %342 = vmatprep.subr.mxu0 0.0
        %343 = vmatpush1.msra.mxu0 %v228
        %344 = vmatprep.subr.mxu0 0.0
        %345 = vmatpush1.msra.mxu0 %v229
        %346 = vmatprep.subr.mxu0 0.0
        %347 = vmatpush1.msra.mxu0 %v230
        %348 = vmatprep.subr.mxu0 0.0
        %349 = vmatpush1.msra.mxu0 %v231
        %350 = vmatprep.subr.mxu0 0.0
        %351 = vmatpush1.msra.mxu0 %v232
        %352 = vmatprep.subr.mxu0 0.0
        %353 = vmatpush1.msra.mxu0 %v233
        %354 = vmatprep.subr.mxu0 0.0
        %355 = vmatpush1.msra.mxu0 %v234
        %356 = vmatprep.subr.mxu0 0.0
        %357 = vmatpush1.msra.mxu0 %v235
        %358 = vmatprep.subr.mxu0 0.0
        %359 = vmatpush1.msra.mxu0 %v236
        %360 = vmatprep.subr.mxu0 0.0
        %361 = vmatpush1.msra.mxu0 %v237
        %362 = vmatprep.subr.mxu0 0.0
        %363 = vmatpush1.msra.mxu0 %v238
        %364 = vmatprep.subr.mxu0 0.0
        %365 = vmatpush1.msra.mxu0 %v239
        %366 = vmatprep.subr.mxu0 0.0
        %367 = vmatpush1.msra.mxu0 %v240
        %368 = vmatprep.subr.mxu0 0.0
        %369 = vmatpush1.msra.mxu0 %v241
        %370 = vmatprep.subr.mxu0 0.0
        %371 = vmatpush1.msra.mxu0 %v242
        %372 = vmatprep.subr.mxu0 0.0
        %373 = vmatpush1.msra.mxu0 %v243
        %374 = vmatprep.subr.mxu0 0.0
        %375 = vmatpush1.msra.mxu0 %v244
        %376 = vmatprep.subr.mxu0 0.0
        %377 = vmatpush1.msra.mxu0 %v245
        %378 = vmatprep.subr.mxu0 0.0
        %379 = vmatpush1.msra.mxu0 %v246
        %380 = vmatprep.subr.mxu0 0.0
        %381 = vmatpush1.msra.mxu0 %v247
        %382 = vmatprep.mubr.f32.mxu0 %v183
        %383 = vmatmul.mubr.f32.gmra.mrb[0].mxu0 %v182
        %v384 = vpop.f32.mrb[0].mxu0
        %v385 = vadd.f32 %v315, %v384
        %v386 = vpop.f32.mrb[0].mxu0
        %387 = vdwg.mxu0
        %388 = vst [vmem:[%s174 + $0x2] sm:$0xf] %v385
        %s389 = scalar_lea.vmem %s174, 8 [#allocation7]
        %390 = vst [vmem:[%s389 - $0x2] sm:$0xf0] %v385
        %s391 = sand.u32 %s75, 1
        %s392 = scalar_lea.sflag [#allocation4], %s391
        %s393 = sand.u32 %s75, 1
        %s394 = smul.addr %s393, 16
        %s395 = scalar_lea.vmem [#allocation7], %s394
        // Predicated region
        $region37: #{tpu_custom_call.1} parent=27 // pred_check
          %p396 = pneg %p85
        $region38: #{tpu_custom_call.1} parent=27 // pred_check_branch
          %398 = sbr.rel (%p396) target = $region40
        $region39: #{tpu_custom_call.1} parent=27 // pred_region
          %s399 = smul.u32 2, %s20
          %s401 = ssub.s32 256, 256
          %402 = vsyncadd %s392, %s401
          %s403 = smul.addr %s399, 128
          %s404 = scalar_lea.hbm %s2, %s403
          %s405 = sshll.u32 %s395, 4
          %s406 = int_to_ptr.vmem [resolvable:$true] %s405
          %411 = dma.vmem_to_hbm [thread:$0]  %s406, 256, %s404, %s392, 128, 128, 8
        $region40: #{tpu_custom_call.1} parent=27 // pred_fallthru
          _
      $region28: #{tpu_custom_call.1} parent=5 // pred_fallthru
        _
      %p412 = scmp.le.s32.totalorder 2, %s15
      // Predicated region
      $region41: #{tpu_custom_call.1} parent=5 // pred_check
        %p413 = pneg %p412
      $region42: #{tpu_custom_call.1} parent=5 // pred_check_branch
        %415 = sbr.rel (%p413) target = $region44
      $region43: #{tpu_custom_call.1} parent=5 // pred_region
        %s416 = ssub.s32 %s15, 2
        // Predicated region
        $region45: #{tpu_custom_call.1} parent=43 // pred_check
          %p417 = pneg %p91
        $region46: #{tpu_custom_call.1} parent=43 // pred_check_branch
          %419 = sbr.rel (%p417) target = $region48
        $region47: #{tpu_custom_call.1} parent=43 // pred_region
          %s420 = sand.u32 %s76, 1
          %s421 = scalar_lea.sflag [#allocation4], %s420
          %s422 = sand.u32 %s76, 1
          %s423 = smul.addr %s422, 16
          %s424 = scalar_lea.vmem [#allocation7], %s423
          %425 = dma.done %s421, 256
        $region48: #{tpu_custom_call.1} parent=43 // pred_fallthru
          _
      $region44: #{tpu_custom_call.1} parent=5 // pred_fallthru
        _
    $region6: #{tpu_custom_call.1} parent=1 // loop_footer
      %s19 = sadd.s32 1, %s15
    $region7: #{tpu_custom_call.1} parent=1 // loop_footer_branch
      %14 = sbr.rel target = $region3
    $region8: #{tpu_custom_call.1} parent=1 // loop_exit
      _
    %426 = vsyncpa [#allocation3], 1
    %s427 = scalar_lea.sflag [#allocation3], 1
    %428 = vsyncpa %s427, 1
    %429 = vsyncpa [#allocation6], 1
    %430 = vsyncpa [#allocation4], 1
    %s431 = scalar_lea.sflag [#allocation4], 1
    %432 = vsyncpa %s431, 1

</llo_original>
